<compile_context>
chip_gen: v6e
topology: v6e:2x2x1
jax: 0.10.0
libtpu: 0.0.40
codegen_flags: <defaults>
</compile_context>

<pallas_src>
import jax
import jax.numpy as jnp
from jax.experimental import pallas as pl
from jax.experimental.pallas import tpu as pltpu


def _cast_kernel(x_ref, o_ref):
    # Elementwise cast of the current VMEM tile to float32 (VPU convert).
    o_ref[...] = x_ref[...].astype(jnp.float32)


# Target ~2 MiB of f32 output per block (512K elements). Double-buffered
# in+out (bf16 in -> ~6 MiB) stays under every generation's scoped-VMEM default.
_TARGET_BLOCK_ELEMS = 512 * 1024


def _cast_2d(x2d):
    """Cast a lane-dense 2D slab (rows, lane) to float32 with a tiled kernel."""
    rows, lane = x2d.shape

    block_rows = max(1, _TARGET_BLOCK_ELEMS // lane)
    # Keep the sublane dim a multiple of 32 (bf16 packs 16/sublane-vreg,
    # int8/fp8 pack 32) so packed dtypes never hit relayout/masked handling.
    block_rows = max(32, (block_rows // 32) * 32)
    if block_rows >= rows:
        # Full-extent block is always layout-legal, regardless of rows % 8.
        block_rows = rows

    grid = (pl.cdiv(rows, block_rows),)

    in_bytes = x2d.size * x2d.dtype.itemsize
    out_bytes = x2d.size * 4

    return pl.pallas_call(
        _cast_kernel,
        out_shape=jax.ShapeDtypeStruct((rows, lane), jnp.float32),
        grid=grid,
        in_specs=[pl.BlockSpec((block_rows, lane), lambda i: (i, 0))],
        out_specs=pl.BlockSpec((block_rows, lane), lambda i: (i, 0)),
        compiler_params=pltpu.CompilerParams(
            dimension_semantics=("parallel",),
        ),
        cost_estimate=pl.CostEstimate(
            flops=0, transcendentals=0, bytes_accessed=in_bytes + out_bytes
        ),
    )(x2d)


def tofp32_pallas(x):
    """Cast `x` (any dtype, any shape) to float32 using a Pallas TPU kernel."""
    orig_shape = x.shape
    total = x.size
    if total == 0:
        return x.astype(jnp.float32)

    x_flat = x.reshape(-1)  # metadata-only reshape, no HBM copy

    # Widest lane-dense last dim that divides the element count exactly
    # (no padding, no output slicing).
    lane = None
    for cand in (1024, 512, 256, 128):
        if total % cand == 0:
            lane = cand
            break

    if lane is None:
        # Ragged total: run the 128-aligned bulk through the kernel and the
        # tiny (<128 elem) tail through plain XLA — no full-array pad/slice.
        bulk = (total // 128) * 128
        if bulk == 0:
            return x_flat.astype(jnp.float32).reshape(orig_shape)
        head = _cast_2d(x_flat[:bulk].reshape(bulk // 128, 128)).reshape(-1)
        tail = x_flat[bulk:].astype(jnp.float32)
        return jnp.concatenate([head, tail]).reshape(orig_shape)

    rows = total // lane
    out2d = _cast_2d(x_flat.reshape(rows, lane))
    return out2d.reshape(orig_shape)


# JIT wrapper so the surrounding reshapes fuse / stay metadata-only.
tofp32_pallas_jit = jax.jit(tofp32_pallas)


if __name__ == "__main__":
    key = jax.random.PRNGKey(0)
    # Small NCHW input (batch=2, channels=4, spatial=16x16), stored in bfloat16
    # so the cast-to-float32 is a real dtype conversion.
    x = jax.random.normal(key, (2, 4, 16, 16), dtype=jnp.float32).astype(jnp.bfloat16)

    out = tofp32_pallas_jit(x)
    out = jax.block_until_ready(out)

    # Correctness check against the reference semantics: input.float()
    ref = x.astype(jnp.float32)
    assert out.dtype == jnp.float32
    assert out.shape == x.shape
    assert jnp.array_equal(out, ref)

    print("KERNEL_OK")
</pallas_src>

<mosaic_0001>
module attributes {stable_mosaic.version = 11 : i64} {
  func.func @_cast_kernel(%arg0: i32, %arg1: memref<2x1024xbf16, #tpu.memory_space<vmem>>, %arg2: memref<2x1024xf32, #tpu.memory_space<vmem>>) attributes {dimension_semantics = [#tpu.dimension_semantics<parallel>], iteration_bounds = array<i64: 1>, scalar_prefetch = 0 : i64, scratch_operands = 0 : i64, tpu.core_type = #tpu.core_type<tc>, window_params = [{transform_indices = @transform_0, window_bounds = array<i64: 2, 1024>}, {transform_indices = @transform_1, window_bounds = array<i64: 2, 1024>}]} {
    %c0 = arith.constant 0 : index
    %c0_0 = arith.constant 0 : index
    %0 = vector.load %arg1[%c0, %c0_0] : memref<2x1024xbf16, #tpu.memory_space<vmem>>, vector<2x1024xbf16>
    %1 = arith.extf %0 : vector<2x1024xbf16> to vector<2x1024xf32>
    %c0_1 = arith.constant 0 : index
    %c0_2 = arith.constant 0 : index
    %2 = vector.load %arg2[%c0_1, %c0_2] : memref<2x1024xf32, #tpu.memory_space<vmem>>, vector<2x1024xf32>
    tpu.vector_store %arg2[%c0_1, %c0_2], %1 {strides = array<i32>} : memref<2x1024xf32, #tpu.memory_space<vmem>>, vector<2x1024xf32>,
    return
  }
  func.func @transform_0(%arg0: i32) -> (i32, i32) {
    %c0_i32 = arith.constant 0 : i32
    %c0_i32_0 = arith.constant 0 : i32
    return %arg0, %c0_i32 : i32, i32
  }
  func.func @transform_1(%arg0: i32) -> (i32, i32) {
    %c0_i32 = arith.constant 0 : i32
    %c0_i32_0 = arith.constant 0 : i32
    return %arg0, %c0_i32 : i32, i32
  }
}

</mosaic_0001>

<llo_original>
// kernel: tofp32_pallas.1
$region0: #{tofp32_pallas.1}
  #allocation0 [shape = 'u32[]', space=smem, size = 0x4, offset = 0x4, fixed_abs, tag = 'smem constant byte address 0x4 - core index']
  #allocation1 [shape = 'u32[144,128]{1,0:T(1,128)}', space=vmem, size = 0x12000, scoped, tag = 'internal scratch']
  %s0 = inlined_call_operand.vmem [shape: bf16[2,1024], index: 0, kind: input, shape index: {}]
  %s1 = inlined_call_operand.vmem [shape: f32[2,1024], index: 1, kind: output, shape index: {}]
  %s2 = sld [smem:[#allocation0]]
  $region14: #{tofp32_pallas.1} parent=0
    _
  %s4 = ssub.s32 1, %s2
  %s5 = scalar_select 0, %s4, %s2
  // Predicated region
  $region2: #{tofp32_pallas.1} parent=0 // pred_check
    _
  $region3: #{tofp32_pallas.1} parent=0 // pred_check_branch
    %7 = sbr.rel (0) target = $region5
  $region4: #{tofp32_pallas.1} parent=0 // pred_region
    _
  $region5: #{tofp32_pallas.1} parent=0 // pred_fallthru
    _
  %v8 = vld [vmem:[%s0] sm:$0xff]
  %v9 = vunpack.c.l.bf16 %v8
  %v10 = vunpack.c.h.bf16 %v8
  %11 = vst [vmem:[%s1] sm:$0xff] %v9
  %12 = vst [vmem:[%s1 + $0x8] sm:$0xff] %v10
  // Predicated region
  $region6: #{tofp32_pallas.1} parent=0 // pred_check
    _
  $region7: #{tofp32_pallas.1} parent=0 // pred_check_branch
    %14 = sbr.rel (0) target = $region9
  $region8: #{tofp32_pallas.1} parent=0 // pred_region
    _
  $region9: #{tofp32_pallas.1} parent=0 // pred_fallthru
    _
  // Predicated region
  $region10: #{tofp32_pallas.1} parent=0 // pred_check
    _
  $region11: #{tofp32_pallas.1} parent=0 // pred_check_branch
    %16 = sbr.rel (0) target = $region13
  $region12: #{tofp32_pallas.1} parent=0 // pred_region
    _
  $region13: #{tofp32_pallas.1} parent=0 // pred_fallthru
    _

</llo_original>
